<compile_context>
chip_gen: v6e
topology: v6e:2x2x1
jax: 0.10.0
libtpu: 0.0.40
codegen_flags: <defaults>
</compile_context>

<pallas_src>
import functools

import jax
import jax.numpy as jnp
from jax.experimental import pallas as pl
from jax.experimental.pallas import tpu as pltpu

BN_EPS = 1e-5


def basic_block_kernel(x_ref, w_ref, p_ref, o_ref, *, flatten_out):
    """One batch tile (TB samples) per grid step.

    x_ref : (TB, L, C)   f32 input block (kept f32 for the residual path)
    w_ref : (2, 3C, C)   bf16 im2col conv weights (conv1, conv2), tap-major rows
    p_ref : (4, C)       f32 folded BatchNorm [scale1; shift1; scale2; shift2]
    o_ref : (TB, 1, L*C) if flatten_out else (TB, L, C)
    """
    x = x_ref[...]                                   # (TB, L, C) f32
    TB, L, C = x.shape
    p = p_ref[...]                                   # (4, C) f32
    s1, b1, s2, b2 = p[0:1], p[1:2], p[2:3], p[3:4]  # (1, C) each, broadcasts over (TB,L,C)

    def circ_conv3(inp, w):
        # circular pad=1, stride=1: out[l] = W_{-1} inp[l-1] + W_0 inp[l] + W_{+1} inp[l+1]
        xm1 = pltpu.roll(inp, shift=1, axis=1)            # inp[(l-1) mod L]
        xp1 = pltpu.roll(inp, shift=L - 1, axis=1)        # inp[(l+1) mod L]
        rows = jnp.concatenate([xm1, inp, xp1], axis=-1)  # (TB, L, 3C) im2col
        rows = rows.reshape(TB * L, 3 * C).astype(jnp.bfloat16)
        out = jnp.dot(rows, w, preferred_element_type=jnp.float32)  # MXU, f32 acc
        return out.reshape(TB, L, C)

    out = circ_conv3(x, w_ref[0])                    # conv1 (stride=1)
    out = jnp.maximum(out * s1 + b1, 0.0)            # norm1 (BN eval, folded) + relu
    out = circ_conv3(out, w_ref[1])                  # conv2
    out = jnp.maximum(out * s2 + b2 + x, 0.0)        # norm2 + residual (downsample=None) + relu
    # TODO(synk): stride > 1 / downsample branch not implemented (module defaults used).

    if flatten_out:
        o_ref[...] = out.reshape(TB, 1, L * C).astype(o_ref.dtype)  # lane-dense store
    else:
        o_ref[...] = out.astype(o_ref.dtype)


def _padded_bytes(shape, itemsize):
    """VMEM footprint of a block: last two dims padded to (8, 128)."""
    *lead, s, l = shape
    out = itemsize * (-(-s // 8) * 8) * (-(-l // 128) * 128)
    for d in lead:
        out *= d
    return out


def basic_block_pallas_nlc(x_nlc, w1, w2, bn1, bn2):
    """x_nlc: (N, L, C) f32.  w1/w2: PyTorch Conv1d weights (Cout, Cin, 3), bias=False.
    bn*: (gamma, beta, running_mean, running_var).  Returns (N, L, C)."""
    N, L, C = x_nlc.shape
    x_nlc = x_nlc.astype(jnp.float32)

    # Fold eval-mode BatchNorm1d into a per-channel scale / shift, packed into (4, C).
    def fold_bn(bn):
        gamma, beta, mean, var = (jnp.asarray(t, jnp.float32) for t in bn)
        scale = gamma / jnp.sqrt(var + BN_EPS)
        shift = beta - mean * scale
        return scale, shift

    s1, b1 = fold_bn(bn1)
    s2, b2 = fold_bn(bn2)
    params = jnp.stack([s1, b1, s2, b2], axis=0)                     # (4, C) f32

    # Conv weights: (Cout, Cin, 3) -> tap-major (3, Cin, Cout) -> im2col (3*Cin, Cout),
    # packed into one (2, 3C, C) bf16 array (one DMA stream, half the weight bytes).
    w1_f = jnp.transpose(w1, (2, 1, 0)).reshape(3 * C, C)
    w2_f = jnp.transpose(w2, (2, 1, 0)).reshape(3 * C, C)
    w_packed = jnp.stack([w1_f, w2_f], axis=0).astype(jnp.bfloat16)  # (2, 3C, C)

    # ---- batch-tile (TB) selection -------------------------------------------------
    tb = max(1, 512 // max(L, 1))                       # >= ~512 matmul rows per step
    tb = min(tb, max(1, N // 2))                        # keep >= 2 grid steps (v7x 2 TCs)
    tb = min(tb, max(1, (2 << 20) // max(L * C * 4, 1)))  # <= ~2 MiB activation block
    n_pad = pl.cdiv(N, tb) * tb
    if n_pad != N:
        x_nlc = jnp.pad(x_nlc, ((0, n_pad - N), (0, 0), (0, 0)))

    # ---- lane-dense output layout ----------------------------------------------------
    # C < 128 would force masked partial-lane stores; when L*C is 128-aligned, store a
    # flattened (TB, 1, L*C) slab instead (full-lane vst) and un-flatten in the wrapper.
    flatten_out = (C % 128 != 0) and ((L * C) % 128 == 0)
    if flatten_out:
        out_shape = jax.ShapeDtypeStruct((n_pad, 1, L * C), jnp.float32)
        out_spec = pl.BlockSpec((tb, 1, L * C), lambda n: (n, 0, 0))
        o_blk = _padded_bytes((tb, 1, L * C), 4)
    else:
        out_shape = jax.ShapeDtypeStruct((n_pad, L, C), jnp.float32)
        out_spec = pl.BlockSpec((tb, L, C), lambda n: (n, 0, 0))
        o_blk = _padded_bytes((tb, L, C), 4)

    # ---- VMEM budget (double-buffered streams + in-kernel f32/bf16 temps) ------------
    x_blk = _padded_bytes((tb, L, C), 4)
    w_blk = _padded_bytes((2, 3 * C, C), 2)
    p_blk = _padded_bytes((4, C), 4)
    vmem_limit = 2 * (x_blk + o_blk + w_blk + p_blk) + 8 * x_blk + (4 << 20)
    vmem_limit = int(min(max(vmem_limit, 16 << 20), 48 << 20))

    # Advisory cost hint for the XLA scheduler (two im2col matmuls per block).
    flops = 2 * 2 * n_pad * L * (3 * C) * C
    bytes_accessed = (n_pad * L * C * 4) * 2 + int(w_packed.size) * 2 + int(params.size) * 4

    kernel = functools.partial(basic_block_kernel, flatten_out=flatten_out)

    out = pl.pallas_call(
        kernel,
        out_shape=out_shape,
        grid=(n_pad // tb,),
        in_specs=[
            pl.BlockSpec((tb, L, C), lambda n: (n, 0, 0)),      # x (batch tile)
            pl.BlockSpec((2, 3 * C, C), lambda n: (0, 0, 0)),   # packed conv weights
            pl.BlockSpec((4, C), lambda n: (0, 0)),             # packed BN scale/shift
        ],
        out_specs=out_spec,
        compiler_params=pltpu.CompilerParams(
            dimension_semantics=("parallel",),
            vmem_limit_bytes=vmem_limit),
        cost_estimate=pl.CostEstimate(flops=flops, transcendentals=0,
                                      bytes_accessed=bytes_accessed),
    )(x_nlc, w_packed, params)

    if flatten_out:
        out = out.reshape(n_pad, L, C)
    return out[:N]


def basic_block_pallas(x_ncl, w1, w2, bn1, bn2):
    """PyTorch-layout entry point: x_ncl (N, C, L) -> (N, C, L)."""
    x_nlc = jnp.transpose(x_ncl, (0, 2, 1))
    out_nlc = basic_block_pallas_nlc(x_nlc, w1, w2, bn1, bn2)
    return jnp.transpose(out_nlc, (0, 2, 1))


# ----------------------- pure-JAX references (for verification) -----------------------
def _circ_conv3_ref(x_nlc, w_flat, mixed):
    # w_flat: (3*Cin, Cout); circular padding=1, stride=1, same im2col row order.
    xm1 = jnp.roll(x_nlc, 1, axis=1)
    xp1 = jnp.roll(x_nlc, -1, axis=1)
    rows = jnp.concatenate([xm1, x_nlc, xp1], axis=-1)
    if mixed:                                    # mirror kernel's bf16 matmul inputs
        rows = rows.astype(jnp.bfloat16).astype(jnp.float32)
    return jnp.einsum('nlk,kc->nlc', rows, w_flat,
                      precision=jax.lax.Precision.HIGHEST)


def basic_block_ref(x_ncl, w1, w2, bn1, bn2, mixed):
    N, C, L = x_ncl.shape
    x = jnp.transpose(x_ncl, (0, 2, 1)).astype(jnp.float32)

    def fold_bn(bn):
        gamma, beta, mean, var = bn
        scale = gamma / jnp.sqrt(var + BN_EPS)
        shift = beta - mean * scale
        return scale.reshape(1, 1, C), shift.reshape(1, 1, C)

    w1_f = jnp.transpose(w1, (2, 1, 0)).reshape(3 * C, C)
    w2_f = jnp.transpose(w2, (2, 1, 0)).reshape(3 * C, C)
    if mixed:
        w1_f = w1_f.astype(jnp.bfloat16).astype(jnp.float32)
        w2_f = w2_f.astype(jnp.bfloat16).astype(jnp.float32)

    s1, b1 = fold_bn(bn1)
    s2, b2 = fold_bn(bn2)
    out = _circ_conv3_ref(x, w1_f, mixed)
    out = jnp.maximum(out * s1 + b1, 0.0)
    out = _circ_conv3_ref(out, w2_f, mixed)
    out = jnp.maximum(out * s2 + b2 + x, 0.0)
    return jnp.transpose(out, (0, 2, 1))


if __name__ == "__main__":
    def make_case(key, N, C, L, w_scale):
        ks = jax.random.split(key, 11)
        x = jax.random.normal(ks[0], (N, C, L), jnp.float32)
        # Conv1d weights, PyTorch layout (Cout, Cin, K=3), bias=False.
        w1 = jax.random.normal(ks[1], (C, C, 3), jnp.float32) * w_scale
        w2 = jax.random.normal(ks[2], (C, C, 3), jnp.float32) * w_scale
        # BatchNorm1d params (gamma, beta, running_mean, running_var), eval mode.
        bn1 = (jax.random.normal(ks[3], (C,)) * 0.1 + 1.0,
               jax.random.normal(ks[4], (C,)) * 0.1,
               jax.random.normal(ks[5], (C,)) * 0.1,
               jax.random.uniform(ks[6], (C,), minval=0.5, maxval=1.5))
        bn2 = (jax.random.normal(ks[7], (C,)) * 0.1 + 1.0,
               jax.random.normal(ks[8], (C,)) * 0.1,
               jax.random.normal(ks[9], (C,)) * 0.1,
               jax.random.uniform(ks[10], (C,), minval=0.5, maxval=1.5))
        return x, w1, w2, bn1, bn2

    key = jax.random.PRNGKey(0)
    k1, k2 = jax.random.split(key)

    # Case 1: small channels (inplanes=planes=8, L=16, N=2, stride=1).
    # Exercises the lane-dense flattened-store path (C % 128 != 0, L*C % 128 == 0).
    x, w1, w2, bn1, bn2 = make_case(k1, N=2, C=8, L=16, w_scale=0.2)
    out = jax.block_until_ready(basic_block_pallas(x, w1, w2, bn1, bn2))
    assert out.shape == x.shape, out.shape

    # Tight check vs. a reference that mirrors the kernel's mixed precision
    # (bf16 matmul inputs/weights, f32 accumulation + f32 BN/ReLU/residual).
    ref_mixed = basic_block_ref(x, w1, w2, bn1, bn2, mixed=True)
    assert jnp.allclose(out, ref_mixed, atol=1e-4, rtol=1e-4), \
        float(jnp.max(jnp.abs(out - ref_mixed)))

    # Loose sanity check vs. the full-f32 PyTorch-semantics reference
    # (difference is only the bf16 rounding of the matmul inputs).
    ref_f32 = basic_block_ref(x, w1, w2, bn1, bn2, mixed=False)
    assert jnp.allclose(out, ref_f32, atol=1e-1, rtol=1e-1), \
        float(jnp.max(jnp.abs(out - ref_f32)))

    # Case 2: lane-aligned channels (C=128) with batch tile TB > 1.
    # Exercises the direct (TB, L, C) store path and the multi-sample im2col matmul.
    x2, w1b, w2b, bn1b, bn2b = make_case(k2, N=8, C=128, L=16, w_scale=0.05)
    out2 = jax.block_until_ready(basic_block_pallas(x2, w1b, w2b, bn1b, bn2b))
    assert out2.shape == x2.shape, out2.shape
    ref2 = basic_block_ref(x2, w1b, w2b, bn1b, bn2b, mixed=True)
    assert jnp.allclose(out2, ref2, atol=1e-2, rtol=1e-2), \
        float(jnp.max(jnp.abs(out2 - ref2)))

    print("KERNEL_OK")
</pallas_src>

<mosaic_0001>
module attributes {stable_mosaic.version = 11 : i64} {
  func.func @basic_block_kernel(%arg0: i32, %arg1: memref<1x16x8xf32, #tpu.memory_space<vmem>>, %arg2: memref<2x24x8xbf16, #tpu.memory_space<vmem>>, %arg3: memref<4x8xf32, #tpu.memory_space<vmem>>, %arg4: memref<1x1x128xf32, #tpu.memory_space<vmem>>) attributes {dimension_semantics = [#tpu.dimension_semantics<parallel>], iteration_bounds = array<i64: 2>, scalar_prefetch = 0 : i64, scratch_operands = 0 : i64, tpu.core_type = #tpu.core_type<tc>, window_params = [{transform_indices = @transform_0, window_bounds = array<i64: 1, 16, 8>}, {pipeline_mode = #tpu.pipeline_mode<synchronous>, transform_indices = @transform_1, window_bounds = array<i64: 2, 24, 8>}, {pipeline_mode = #tpu.pipeline_mode<synchronous>, transform_indices = @transform_2, window_bounds = array<i64: 4, 8>}, {transform_indices = @transform_3, window_bounds = array<i64: 1, 1, 128>}]} {
    %c0 = arith.constant 0 : index
    %c0_0 = arith.constant 0 : index
    %c0_1 = arith.constant 0 : index
    %0 = vector.load %arg1[%c0, %c0_0, %c0_1] : memref<1x16x8xf32, #tpu.memory_space<vmem>>, vector<1x16x8xf32>
    %c0_2 = arith.constant 0 : index
    %c0_3 = arith.constant 0 : index
    %1 = vector.load %arg3[%c0_2, %c0_3] : memref<4x8xf32, #tpu.memory_space<vmem>>, vector<4x8xf32>
    %2 = vector.extract_strided_slice %1 {offsets = [0, 0], sizes = [1, 8], strides = [1, 1]} : vector<4x8xf32> to vector<1x8xf32>
    %3 = vector.extract_strided_slice %1 {offsets = [1, 0], sizes = [1, 8], strides = [1, 1]} : vector<4x8xf32> to vector<1x8xf32>
    %4 = vector.extract_strided_slice %1 {offsets = [2, 0], sizes = [1, 8], strides = [1, 1]} : vector<4x8xf32> to vector<1x8xf32>
    %5 = vector.extract_strided_slice %1 {offsets = [3, 0], sizes = [1, 8], strides = [1, 1]} : vector<4x8xf32> to vector<1x8xf32>
    %c0_4 = arith.constant 0 : index
    %c0_5 = arith.constant 0 : index
    %c0_6 = arith.constant 0 : index
    %6 = vector.load %arg2[%c0_4, %c0_5, %c0_6] : memref<2x24x8xbf16, #tpu.memory_space<vmem>>, vector<1x24x8xbf16>
    %7 = vector.shape_cast %6 : vector<1x24x8xbf16> to vector<24x8xbf16>
    %c1_i32 = arith.constant 1 : i32
    %8 = tpu.dynamic_rotate %0 by %c1_i32 dim 1 : vector<1x16x8xf32>, i32 -> vector<1x16x8xf32>
    %c15_i32 = arith.constant 15 : i32
    %9 = tpu.dynamic_rotate %0 by %c15_i32 dim 1 : vector<1x16x8xf32>, i32 -> vector<1x16x8xf32>
    %10 = tpu.concatenate %8, %0, %9 in 2 : vector<1x16x8xf32>, vector<1x16x8xf32>, vector<1x16x8xf32> -> vector<1x16x24xf32>
    %11 = vector.shape_cast %10 : vector<1x16x24xf32> to vector<16x24xf32>
    %12 = arith.truncf %11 : vector<16x24xf32> to vector<16x24xbf16>
    %cst = arith.constant dense<0.000000e+00> : vector<16x8xf32>
    %13 = tpu.matmul %12, %7, %cst {dimension_numbers = #tpu.dot_dimension_numbers<[1], [0], [0], [1], [0, 0, 1, 1], [], []>} : vector<16x24xbf16>, vector<24x8xbf16>, vector<16x8xf32> -> vector<16x8xf32>
    %14 = vector.shape_cast %13 : vector<16x8xf32> to vector<1x16x8xf32>
    %15 = vector.shape_cast %2 : vector<1x8xf32> to vector<1x1x8xf32>
    %16 = vector.broadcast %15 : vector<1x1x8xf32> to vector<1x16x8xf32>
    %17 = arith.mulf %14, %16 : vector<1x16x8xf32>
    %18 = vector.shape_cast %3 : vector<1x8xf32> to vector<1x1x8xf32>
    %19 = vector.broadcast %18 : vector<1x1x8xf32> to vector<1x16x8xf32>
    %20 = arith.addf %17, %19 : vector<1x16x8xf32>
    %cst_7 = arith.constant 0.000000e+00 : f32
    %21 = vector.broadcast %cst_7 : f32 to vector<1x16x8xf32>
    %22 = arith.maximumf %20, %21 : vector<1x16x8xf32>
    %c1 = arith.constant 1 : index
    %c0_8 = arith.constant 0 : index
    %c0_9 = arith.constant 0 : index
    %23 = vector.load %arg2[%c1, %c0_8, %c0_9] : memref<2x24x8xbf16, #tpu.memory_space<vmem>>, vector<1x24x8xbf16>
    %24 = vector.shape_cast %23 : vector<1x24x8xbf16> to vector<24x8xbf16>
    %c1_i32_10 = arith.constant 1 : i32
    %25 = tpu.dynamic_rotate %22 by %c1_i32_10 dim 1 : vector<1x16x8xf32>, i32 -> vector<1x16x8xf32>
    %c15_i32_11 = arith.constant 15 : i32
    %26 = tpu.dynamic_rotate %22 by %c15_i32_11 dim 1 : vector<1x16x8xf32>, i32 -> vector<1x16x8xf32>
    %27 = tpu.concatenate %25, %22, %26 in 2 : vector<1x16x8xf32>, vector<1x16x8xf32>, vector<1x16x8xf32> -> vector<1x16x24xf32>
    %28 = vector.shape_cast %27 : vector<1x16x24xf32> to vector<16x24xf32>
    %29 = arith.truncf %28 : vector<16x24xf32> to vector<16x24xbf16>
    %cst_12 = arith.constant dense<0.000000e+00> : vector<16x8xf32>
    %30 = tpu.matmul %29, %24, %cst_12 {dimension_numbers = #tpu.dot_dimension_numbers<[1], [0], [0], [1], [0, 0, 1, 1], [], []>} : vector<16x24xbf16>, vector<24x8xbf16>, vector<16x8xf32> -> vector<16x8xf32>
    %31 = vector.shape_cast %30 : vector<16x8xf32> to vector<1x16x8xf32>
    %32 = vector.shape_cast %4 : vector<1x8xf32> to vector<1x1x8xf32>
    %33 = vector.broadcast %32 : vector<1x1x8xf32> to vector<1x16x8xf32>
    %34 = arith.mulf %31, %33 : vector<1x16x8xf32>
    %35 = vector.shape_cast %5 : vector<1x8xf32> to vector<1x1x8xf32>
    %36 = vector.broadcast %35 : vector<1x1x8xf32> to vector<1x16x8xf32>
    %37 = arith.addf %34, %36 : vector<1x16x8xf32>
    %38 = arith.addf %37, %0 : vector<1x16x8xf32>
    %cst_13 = arith.constant 0.000000e+00 : f32
    %39 = vector.broadcast %cst_13 : f32 to vector<1x16x8xf32>
    %40 = arith.maximumf %38, %39 : vector<1x16x8xf32>
    %41 = vector.shape_cast %40 : vector<1x16x8xf32> to vector<1x1x128xf32>
    %c0_14 = arith.constant 0 : index
    %c0_15 = arith.constant 0 : index
    %c0_16 = arith.constant 0 : index
    %42 = vector.load %arg4[%c0_14, %c0_15, %c0_16] : memref<1x1x128xf32, #tpu.memory_space<vmem>>, vector<1x1x128xf32>
    tpu.vector_store %arg4[%c0_14, %c0_15, %c0_16], %41 {strides = array<i32>} : memref<1x1x128xf32, #tpu.memory_space<vmem>>, vector<1x1x128xf32>,
    return
  }
  func.func @transform_0(%arg0: i32) -> (i32, i32, i32) {
    %c0_i32 = arith.constant 0 : i32
    %c0_i32_0 = arith.constant 0 : i32
    %c0_i32_1 = arith.constant 0 : i32
    return %arg0, %c0_i32, %c0_i32_0 : i32, i32, i32
  }
  func.func @transform_1(%arg0: i32) -> (i32, i32, i32) {
    %c0_i32 = arith.constant 0 : i32
    %c0_i32_0 = arith.constant 0 : i32
    %c0_i32_1 = arith.constant 0 : i32
    %c0_i32_2 = arith.constant 0 : i32
    return %c0_i32, %c0_i32_0, %c0_i32_1 : i32, i32, i32
  }
  func.func @transform_2(%arg0: i32) -> (i32, i32) {
    %c0_i32 = arith.constant 0 : i32
    %c0_i32_0 = arith.constant 0 : i32
    %c0_i32_1 = arith.constant 0 : i32
    return %c0_i32, %c0_i32_0 : i32, i32
  }
  func.func @transform_3(%arg0: i32) -> (i32, i32, i32) {
    %c0_i32 = arith.constant 0 : i32
    %c0_i32_0 = arith.constant 0 : i32
    %c0_i32_1 = arith.constant 0 : i32
    return %arg0, %c0_i32, %c0_i32_0 : i32, i32, i32
  }
}

</mosaic_0001>

<llo_original>
// kernel: tpu_custom_call.1
$region0: #{tpu_custom_call.1}
  #allocation0 [shape = 'u32[]', space=smem, size = 0x4, offset = 0x4, fixed_abs, tag = 'smem constant byte address 0x4 - core index']
  #allocation1 [shape = 'u32[144,128]{1,0:T(1,128)}', space=vmem, size = 0x12000, scoped, tag = 'internal scratch']
  %s0 = inlined_call_operand.vmem [shape: f32[2,16,8], index: 0, kind: input, shape index: {}]
  %s1 = inlined_call_operand.vmem [shape: bf16[2,24,8], index: 1, kind: input, shape index: {}]
  %s2 = inlined_call_operand.vmem [shape: f32[4,8], index: 2, kind: input, shape index: {}]
  %s3 = inlined_call_operand.hbm [shape: f32[2,1,128], index: 3, kind: output, shape index: {}]
  %s4 = sld [smem:[#allocation0]]
  $region45: #{tpu_custom_call.1} parent=0
    _
  %s6 = ssub.s32 1, %s4
  %s7 = scalar_select 0, %s6, %s4
  $region1: #{tpu_custom_call.1} parent=0
    #allocation2 [shape = 'u8[1024]{0}', space=vmem, size = 0x400, scoped, tag = 'output window, operand 0']
    #allocation3 [shape = 's32[2]{0}', space=sflag, size = 0x8, scoped, tag = 'scoped memory for tpu_custom_call.1']
    %8 = vsyncpa [#allocation3], 0
    %s9 = scalar_lea.sflag [#allocation3], 1
    %10 = vsyncpa %s9, 0
    loop: start=0, step=1, limit=4
    $region2: #{tpu_custom_call.1} parent=1 // loop_pre_header
      _
    $region3: #{tpu_custom_call.1} parent=1 // loop_header
      %s12 = sphi 0, %s16
      %p13 = scmp.ge.s32.totalorder %s12, 4
      %s22 = sphi 0, %s24
      %s25 = sphi 0, %s22
      %s26 = sphi 0, %s25
      %s42 = sphi 0, %s26
      %s46 = sphi 0, %s46
      %s48 = sphi 0, %s46
      %s49 = sphi 0, %s48
      %s63 = sphi 0, %s49
      %s67 = sphi 0, %s67
      %s69 = sphi 0, %s67
      %s70 = sphi 0, %s69
      %s84 = sphi 0, %s70
      %s90 = sphi 0, %s92
      %s93 = sphi 0, %s90
      %s94 = sphi 0, %s93
      %s110 = sphi 0, %s94
    $region4: #{tpu_custom_call.1} parent=1 // loop_header_branch
      %15 = sbr.rel (%p13) target = $region8
    $region5: #{tpu_custom_call.1} parent=1 // loop_body
      %s17 = ssub.s32 %s12, 1
      %s18 = ssub.s32 %s12, 2
      %s19 = sadd.s32 %s12, 1
      %s20 = ssub.s32 %s12, %s19
      %p21 = scmp.eq.s32.totalorder %s20, 0
      %s23 = sadd.s32 %s22, 1
      %s24 = scalar_select %p21, %s22, %s23
      %p27 = pneg %p21
      %p28 = scmp.eq.s32.totalorder %s12, 1
      %p29 = por %p27, %p28
      %p30 = scmp.ne.s32.totalorder %s22, %s25
      %p31 = scmp.eq.s32.totalorder %s12, 0
      %p32 = por %p30, %p31
      %p33 = scmp.ne.s32.totalorder %s22, %s25
      %p34 = scmp.eq.s32.totalorder %s17, 1
      %p35 = por %p33, %p34
      %p36 = scmp.ne.s32.totalorder %s25, %s26
      %p37 = scmp.eq.s32.totalorder %s17, 0
      %p38 = por %p36, %p37
      %p39 = scmp.ne.s32.totalorder %s25, %s26
      %p40 = scmp.eq.s32.totalorder %s18, 1
      %p41 = por %p39, %p40
      %p43 = scmp.ne.s32.totalorder %s26, %s42
      %p44 = scmp.eq.s32.totalorder %s18, 0
      %p45 = por %p43, %p44
      %s47 = sadd.s32 %s46, 1
      %p50 = scmp.eq.s32.totalorder %s12, 1
      %p51 = scmp.ne.s32.totalorder %s46, %s48
      %p52 = scmp.eq.s32.totalorder %s12, 0
      %p53 = por %p51, %p52
      %p54 = scmp.ne.s32.totalorder %s46, %s48
      %p55 = scmp.eq.s32.totalorder %s17, 1
      %p56 = por %p54, %p55
      %p57 = scmp.ne.s32.totalorder %s48, %s49
      %p58 = scmp.eq.s32.totalorder %s17, 0
      %p59 = por %p57, %p58
      %p60 = scmp.ne.s32.totalorder %s48, %s49
      %p61 = scmp.eq.s32.totalorder %s18, 1
      %p62 = por %p60, %p61
      %p64 = scmp.ne.s32.totalorder %s49, %s63
      %p65 = scmp.eq.s32.totalorder %s18, 0
      %p66 = por %p64, %p65
      %s68 = sadd.s32 %s67, 1
      %p71 = scmp.eq.s32.totalorder %s12, 1
      %p72 = scmp.ne.s32.totalorder %s67, %s69
      %p73 = scmp.eq.s32.totalorder %s12, 0
      %p74 = por %p72, %p73
      %p75 = scmp.ne.s32.totalorder %s67, %s69
      %p76 = scmp.eq.s32.totalorder %s17, 1
      %p77 = por %p75, %p76
      %p78 = scmp.ne.s32.totalorder %s69, %s70
      %p79 = scmp.eq.s32.totalorder %s17, 0
      %p80 = por %p78, %p79
      %p81 = scmp.ne.s32.totalorder %s69, %s70
      %p82 = scmp.eq.s32.totalorder %s18, 1
      %p83 = por %p81, %p82
      %p85 = scmp.ne.s32.totalorder %s70, %s84
      %p86 = scmp.eq.s32.totalorder %s18, 0
      %p87 = por %p85, %p86
      %s88 = ssub.s32 %s12, %s19
      %p89 = scmp.eq.s32.totalorder %s88, 0
      %s91 = sadd.s32 %s90, 1
      %s92 = scalar_select %p89, %s90, %s91
      %p95 = pneg %p89
      %p96 = scmp.eq.s32.totalorder %s12, 1
      %p97 = por %p95, %p96
      %p98 = scmp.ne.s32.totalorder %s90, %s93
      %p99 = scmp.eq.s32.totalorder %s12, 0
      %p100 = por %p98, %p99
      %p101 = scmp.ne.s32.totalorder %s90, %s93
      %p102 = scmp.eq.s32.totalorder %s17, 1
      %p103 = por %p101, %p102
      %p104 = scmp.ne.s32.totalorder %s93, %s94
      %p105 = scmp.eq.s32.totalorder %s17, 0
      %p106 = por %p104, %p105
      %p107 = scmp.ne.s32.totalorder %s93, %s94
      %p108 = scmp.eq.s32.totalorder %s18, 1
      %p109 = por %p107, %p108
      %p111 = scmp.ne.s32.totalorder %s94, %s110
      %p112 = scmp.eq.s32.totalorder %s18, 0
      %p113 = por %p111, %p112
      %p114 = scmp.le.s32.totalorder 1, %s12
      %p115 = scmp.lt.s32.totalorder %s12, 3
      %p116 = pnand %p114, %p115
      %p117 = pneg %p116
      // Predicated region
      $region9: #{tpu_custom_call.1} parent=5 // pred_check
        _
      $region10: #{tpu_custom_call.1} parent=5 // pred_check_branch
        %119 = sbr.rel (%p116) target = $region12
      $region11: #{tpu_custom_call.1} parent=5 // pred_region
        %s120 = ssub.s32 %s12, 1
        // Predicated region
        $region13: #{tpu_custom_call.1} parent=11 // pred_check
          %p121 = pneg %p59
        $region14: #{tpu_custom_call.1} parent=11 // pred_check_branch
          %123 = sbr.rel (%p121) target = $region16
        $region15: #{tpu_custom_call.1} parent=11 // pred_region
          _
        $region16: #{tpu_custom_call.1} parent=11 // pred_fallthru
          _
        // Predicated region
        $region17: #{tpu_custom_call.1} parent=11 // pred_check
          %p124 = pneg %p80
        $region18: #{tpu_custom_call.1} parent=11 // pred_check_branch
          %126 = sbr.rel (%p124) target = $region20
        $region19: #{tpu_custom_call.1} parent=11 // pred_region
          _
        $region20: #{tpu_custom_call.1} parent=11 // pred_fallthru
          _
      $region12: #{tpu_custom_call.1} parent=5 // pred_fallthru
        _
      %p127 = scmp.lt.s32.totalorder %s12, 2
      // Predicated region
      $region21: #{tpu_custom_call.1} parent=5 // pred_check
        %p128 = pneg %p127
      $region22: #{tpu_custom_call.1} parent=5 // pred_check_branch
        %130 = sbr.rel (%p128) target = $region24
      $region23: #{tpu_custom_call.1} parent=5 // pred_region
        // Predicated region
        $region25: #{tpu_custom_call.1} parent=23 // pred_check
          %p131 = pneg %p32
        $region26: #{tpu_custom_call.1} parent=23 // pred_check_branch
          %133 = sbr.rel (%p131) target = $region28
        $region27: #{tpu_custom_call.1} parent=23 // pred_region
          %p134 = scmp.lt.s32.totalorder %s12, 1
          %s135 = scalar_select %p134, %s12, 1
          %s136 = smul.addr %s135, 2
          %s137 = smul.addr %s136, 8
          %s138 = scalar_lea.vmem %s0, %s137
        $region28: #{tpu_custom_call.1} parent=23 // pred_fallthru
          _
      $region24: #{tpu_custom_call.1} parent=5 // pred_fallthru
        _
      %p139 = scmp.le.s32.totalorder 1, %s12
      %p140 = scmp.lt.s32.totalorder %s12, 3
      %p141 = pnand %p139, %p140
      %p142 = pneg %p141
      // Predicated region
      $region29: #{tpu_custom_call.1} parent=5 // pred_check
        _
      $region30: #{tpu_custom_call.1} parent=5 // pred_check_branch
        %144 = sbr.rel (%p141) target = $region32
      $region31: #{tpu_custom_call.1} parent=5 // pred_region
        %s145 = ssub.s32 %s12, 1
        %p146 = scmp.lt.s32.totalorder %s17, 1
        %s147 = scalar_select %p146, %s17, 1
        %s148 = smul.addr %s147, 2
        %s149 = smul.addr %s148, 8
        %s150 = scalar_lea.vmem %s0, %s149
        %p151 = pneg %p38
        %p152 = pneg %p35
        %p153 = pneg %p59
        %p154 = pneg %p56
        %p155 = pneg %p80
        %p156 = pneg %p77
        %p157 = pneg %p106
        %p158 = pneg %p103
        %s159 = sand.u32 %s93, 1
        %s160 = scalar_lea.sflag [#allocation3], %s159
        %s161 = sand.u32 %s93, 1
        %s162 = scalar_lea.vmem [#allocation2], %s161
        %p163 = scmp.lt.s32.totalorder %s17, 1
        %s164 = scalar_select %p163, %s17, 1
        %s165 = smul.addr %s164, 2
        %s166 = smul.addr %s165, 8
        %s167 = scalar_lea.vmem %s0, %s166
        %v169 = vld [vmem:[%s167] sm:$0xff]
        %v170 = vld [vmem:[%s167 + $0x8] sm:$0xff]
        %v171 = vld [vmem:[%s2] sm:$0xf]
        %v172 = vld [vmem:[%s1] sm:$0xf]
        %v173 = vld [vmem:[%s1 + $0x4] sm:$0xf]
        %v174 = vld [vmem:[%s1 + $0x8] sm:$0xf]
        %v175 = vrot.slane %v169, 7
        %v176 = vrot.slane %v170, 7
        %v177 = vlaneseq
        %v178 = vshrl.u32 %v177, 7
        %vm179 = vcmp.lt.s32.totalorder %v178, 1
        %v180 = vsel %vm179, %v175, %v176
        %v181 = vsel %vm179, %v176, %v175
        %v182 = vrot.slane %v169, 1
        %v183 = vrot.slane %v170, 1
        %vm184 = vcmp.lt.s32.totalorder %v178, 7
        %v185 = vsel %vm184, %v182, %v183
        %v186 = vsel %vm184, %v183, %v182
        %189 = vrot.lane.b32.xlu0 %v169, 8
        %v190 = vpop.permute.xlu0 %189
        %191 = vrot.lane.b32.xlu0 %v170, 8
        %v192 = vpop.permute.xlu0 %191
        %197 = vrot.lane.b32.xlu0 %v185, 16
        %v198 = vpop.permute.xlu0 %197
        %199 = vrot.lane.b32.xlu0 %v186, 16
        %v200 = vpop.permute.xlu0 %199
        %vm203 = vcmask 64512
        %v204 = vsel %vm203, %v181, %v190
        %v205 = vsel %vm203, %v180, %v192
        %vm206 = vcmask 130048
        %v207 = vsel %vm206, %v204, %v198
        %v208 = vsel %vm206, %v205, %v200
        %v209 = vpack.c.bf16 %v208, %v207
        %v213 = vunpack.c.l.b16 %v172
        %v214 = vunpack.c.l.b16 %v173
        %v215 = vunpack.c.l.b16 %v174
        %v216 = vpack.c.b16 %v214, %v213
        %v217 = vpack.c.b16 %v215, %v215
        %vm219 = vcmask 195584
        %v221 = vsel %vm219, %v209, 0
        %vm223 = vcmask 1043456
        %v225 = vsel %vm223, %v217, 0
        %227 = vmatprep.subr.bf16.mxu0 0
        %228 = vmatpush1.bf16.msra.mxu0 0
        %229 = vmatprep.subr.bf16.mxu0 0
        %230 = vmatpush1.bf16.msra.mxu0 0
        %231 = vmatprep.subr.bf16.mxu0 0
        %232 = vmatpush1.bf16.msra.mxu0 0
        %233 = vmatprep.subr.bf16.mxu0 0
        %234 = vmatpush1.bf16.msra.mxu0 0
        %235 = vmatprep.subr.bf16.mxu0 0
        %236 = vmatpush1.bf16.msra.mxu0 0
        %237 = vmatprep.subr.bf16.mxu0 0
        %238 = vmatpush1.bf16.msra.mxu0 0
        %239 = vmatprep.subr.bf16.mxu0 0
        %240 = vmatpush1.bf16.msra.mxu0 %v225
        %241 = vmatprep.subr.bf16.mxu0 0
        %242 = vmatpush1.bf16.msra.mxu0 %v216
        %243 = vmatprep.subr.bf16.mxu0 0
        %244 = vmatpush2.bf16.msra.mxu0 0
        %245 = vmatprep.subr.bf16.mxu0 0
        %246 = vmatpush2.bf16.msra.mxu0 0
        %247 = vmatprep.subr.bf16.mxu0 0
        %248 = vmatpush2.bf16.msra.mxu0 0
        %249 = vmatprep.subr.bf16.mxu0 0
        %250 = vmatpush2.bf16.msra.mxu0 0
        %251 = vmatprep.subr.bf16.mxu0 0
        %252 = vmatpush2.bf16.msra.mxu0 0
        %253 = vmatprep.subr.bf16.mxu0 0
        %254 = vmatpush2.bf16.msra.mxu0 0
        %255 = vmatprep.subr.bf16.mxu0 0
        %256 = vmatpush2.bf16.msra.mxu0 0
        %257 = vmatprep.subr.bf16.mxu0 0
        %258 = vmatpush2.bf16.msra.mxu0 0
        %259 = vmatprep.mubr.bf16.mxu0 0
        %260 = vmatmul.mubr.bf16.gmra.mxu0 %v221
        %v261 = vpop.f32.mrf.mxu0
        %v262 = vadd.f32 0.0, %v261
        %v263 = vpop.f32.mrf.mxu0
        %v264 = vpop.f32.mrf.mxu0
        %v265 = vadd.f32 0.0, %v264
        %v266 = vpop.f32.mrf.mxu0
        %267 = vdwg.mxu0
        %v268 = vlaneseq
        %v269 = vshrl.u32 %v268, 7
        %v270 = vsub.s32 0, %v269
        %v271 = vrot.slane %v171, %v270
        %v272 = vmul.f32 %v262, %v271
        %v273 = vmul.f32 %v265, %v271
        %v274 = vlaneseq
        %v275 = vshrl.u32 %v274, 7
        %v276 = vsub.s32 1, %v275
        %v277 = vrot.slane %v171, %v276
        %v278 = vadd.f32 %v272, %v277
        %v279 = vadd.f32 %v273, %v277
        %v280 = vmax.f32 %v278, 0.0
        %v281 = vmax.f32 %v279, 0.0
        %s282 = scalar_lea.vmem %s1, 12
        %v283 = vld [vmem:[%s282] sm:$0xf]
        %v284 = vld [vmem:[%s282 + $0x4] sm:$0xf]
        %v285 = vld [vmem:[%s282 + $0x8] sm:$0xf]
        %v286 = vrot.slane %v280, 7
        %v287 = vrot.slane %v281, 7
        %v288 = vsel %vm179, %v286, %v287
        %v289 = vsel %vm179, %v287, %v286
        %v290 = vrot.slane %v280, 1
        %v291 = vrot.slane %v281, 1
        %v292 = vsel %vm184, %v290, %v291
        %v293 = vsel %vm184, %v291, %v290
        %296 = vrot.lane.b32.xlu0 %v280, 8
        %v297 = vpop.permute.xlu0 %296
        %298 = vrot.lane.b32.xlu0 %v281, 8
        %v299 = vpop.permute.xlu0 %298
        %304 = vrot.lane.b32.xlu0 %v292, 16
        %v305 = vpop.permute.xlu0 %304
        %306 = vrot.lane.b32.xlu0 %v293, 16
        %v307 = vpop.permute.xlu0 %306
        %v310 = vsel %vm203, %v289, %v297
        %v311 = vsel %vm203, %v288, %v299
        %v312 = vsel %vm206, %v310, %v305
        %v313 = vsel %vm206, %v311, %v307
        %v314 = vpack.c.bf16 %v313, %v312
        %v318 = vunpack.c.l.b16 %v283
        %v319 = vunpack.c.l.b16 %v284
        %v320 = vunpack.c.l.b16 %v285
        %v321 = vpack.c.b16 %v319, %v318
        %v322 = vpack.c.b16 %v320, %v320
        %v325 = vsel %vm219, %v314, 0
        %v328 = vsel %vm223, %v322, 0
        %330 = vmatprep.subr.bf16.mxu0 0
        %331 = vmatpush1.bf16.msra.mxu0 0
        %332 = vmatprep.subr.bf16.mxu0 0
        %333 = vmatpush1.bf16.msra.mxu0 0
        %334 = vmatprep.subr.bf16.mxu0 0
        %335 = vmatpush1.bf16.msra.mxu0 0
        %336 = vmatprep.subr.bf16.mxu0 0
        %337 = vmatpush1.bf16.msra.mxu0 0
        %338 = vmatprep.subr.bf16.mxu0 0
        %339 = vmatpush1.bf16.msra.mxu0 0
        %340 = vmatprep.subr.bf16.mxu0 0
        %341 = vmatpush1.bf16.msra.mxu0 0
        %342 = vmatprep.subr.bf16.mxu0 0
        %343 = vmatpush1.bf16.msra.mxu0 %v328
        %344 = vmatprep.subr.bf16.mxu0 0
        %345 = vmatpush1.bf16.msra.mxu0 %v321
        %346 = vmatprep.subr.bf16.mxu0 0
        %347 = vmatpush2.bf16.msra.mxu0 0
        %348 = vmatprep.subr.bf16.mxu0 0
        %349 = vmatpush2.bf16.msra.mxu0 0
        %350 = vmatprep.subr.bf16.mxu0 0
        %351 = vmatpush2.bf16.msra.mxu0 0
        %352 = vmatprep.subr.bf16.mxu0 0
        %353 = vmatpush2.bf16.msra.mxu0 0
        %354 = vmatprep.subr.bf16.mxu0 0
        %355 = vmatpush2.bf16.msra.mxu0 0
        %356 = vmatprep.subr.bf16.mxu0 0
        %357 = vmatpush2.bf16.msra.mxu0 0
        %358 = vmatprep.subr.bf16.mxu0 0
        %359 = vmatpush2.bf16.msra.mxu0 0
        %360 = vmatprep.subr.bf16.mxu0 0
        %361 = vmatpush2.bf16.msra.mxu0 0
        %362 = vmatprep.mubr.bf16.mxu0 0
        %363 = vmatmul.mubr.bf16.gmra.mxu0 %v325
        %v364 = vpop.f32.mrf.mxu0
        %v365 = vadd.f32 0.0, %v364
        %v366 = vpop.f32.mrf.mxu0
        %v367 = vpop.f32.mrf.mxu0
        %v368 = vadd.f32 0.0, %v367
        %v369 = vpop.f32.mrf.mxu0
        %370 = vdwg.mxu0
        %v371 = vlaneseq
        %v372 = vshrl.u32 %v371, 7
        %v373 = vsub.s32 2, %v372
        %v374 = vrot.slane %v171, %v373
        %v375 = vmul.f32 %v365, %v374
        %v376 = vmul.f32 %v368, %v374
        %v377 = vlaneseq
        %v378 = vshrl.u32 %v377, 7
        %v379 = vsub.s32 3, %v378
        %v380 = vrot.slane %v171, %v379
        %v381 = vadd.f32 %v375, %v380
        %v382 = vadd.f32 %v376, %v380
        %v383 = vadd.f32 %v381, %v169
        %v384 = vadd.f32 %v382, %v170
        %v385 = vmax.f32 %v383, 0.0
        %v386 = vmax.f32 %v384, 0.0
        %v387 = vcombine.high %v385, 0.0
        %v389 = vunpack.c.l.s4 1983009808
        %v390 = vunpack.c.0.s8 %v389
        %v391 = vlaneseq
        %v392 = vshrl.u32 %v391, 7
        %v393 = vsub.s32 %v390, %v392
        %v394 = vrot.slane %v385, %v393
        %v396 = vunpack.c.l.s4 1983009808
        %v397 = vunpack.c.0.s8 %v396
        %v398 = vlaneseq
        %v399 = vshrl.u32 %v398, 7
        %v400 = vsub.s32 %v397, %v399
        %v401 = vrot.slane %v387, %v400
        %v402 = vcombine.high %v394, 0.0
        %v404 = vunpack.c.l.s4 1934713408
        %v405 = vunpack.c.0.s8 %v404
        %v406 = vlaneseq
        %v407 = vshrl.u32 %v406, 7
        %v408 = vsub.s32 %v405, %v407
        %v409 = vrot.slane %v394, %v408
        %v411 = vunpack.c.l.s4 1934713408
        %v412 = vunpack.c.0.s8 %v411
        %v413 = vlaneseq
        %v414 = vshrl.u32 %v413, 7
        %v415 = vsub.s32 %v412, %v414
        %v416 = vrot.slane %v402, %v415
        %v417 = vcombine.high %v401, 0.0
        %v419 = vunpack.c.l.s4 1934713408
        %v420 = vunpack.c.0.s8 %v419
        %v421 = vlaneseq
        %v422 = vshrl.u32 %v421, 7
        %v423 = vsub.s32 %v420, %v422
        %v424 = vrot.slane %v401, %v423
        %v426 = vunpack.c.l.s4 1934713408
        %v427 = vunpack.c.0.s8 %v426
        %v428 = vlaneseq
        %v429 = vshrl.u32 %v428, 7
        %v430 = vsub.s32 %v427, %v429
        %v431 = vrot.slane %v417, %v430
        %v432 = vcombine.high %v409, 0.0
        %v433 = vcombine.high %v416, 0.0
        %v434 = vcombine.high %v424, 0.0
        %v435 = vcombine.high %v431, 0.0
        %v436 = vcombine.high %v386, 0.0
        %v438 = vunpack.c.l.s4 1983009808
        %v439 = vunpack.c.0.s8 %v438
        %v440 = vlaneseq
        %v441 = vshrl.u32 %v440, 7
        %v442 = vsub.s32 %v439, %v441
        %v443 = vrot.slane %v386, %v442
        %v445 = vunpack.c.l.s4 1983009808
        %v446 = vunpack.c.0.s8 %v445
        %v447 = vlaneseq
        %v448 = vshrl.u32 %v447, 7
        %v449 = vsub.s32 %v446, %v448
        %v450 = vrot.slane %v436, %v449
        %v451 = vcombine.high %v443, 0.0
        %v453 = vunpack.c.l.s4 1934713408
        %v454 = vunpack.c.0.s8 %v453
        %v455 = vlaneseq
        %v456 = vshrl.u32 %v455, 7
        %v457 = vsub.s32 %v454, %v456
        %v458 = vrot.slane %v443, %v457
        %v460 = vunpack.c.l.s4 1934713408
        %v461 = vunpack.c.0.s8 %v460
        %v462 = vlaneseq
        %v463 = vshrl.u32 %v462, 7
        %v464 = vsub.s32 %v461, %v463
        %v465 = vrot.slane %v451, %v464
        %v466 = vcombine.high %v450, 0.0
        %v468 = vunpack.c.l.s4 1934713408
        %v469 = vunpack.c.0.s8 %v468
        %v470 = vlaneseq
        %v471 = vshrl.u32 %v470, 7
        %v472 = vsub.s32 %v469, %v471
        %v473 = vrot.slane %v450, %v472
        %v475 = vunpack.c.l.s4 1934713408
        %v476 = vunpack.c.0.s8 %v475
        %v477 = vlaneseq
        %v478 = vshrl.u32 %v477, 7
        %v479 = vsub.s32 %v476, %v478
        %v480 = vrot.slane %v466, %v479
        %v481 = vcombine.high %v458, 0.0
        %v482 = vcombine.high %v465, 0.0
        %v483 = vcombine.high %v473, 0.0
        %v484 = vcombine.high %v480, 0.0
        %486 = vrot.lane.b32.xlu0 %v432, 8
        %v487 = vpop.permute.xlu0 %486
        %490 = vrot.lane.b32.xlu0 %v416, 16
        %v491 = vpop.permute.xlu0 %490
        %494 = vrot.lane.b32.xlu0 %v433, 24
        %v495 = vpop.permute.xlu0 %494
        %498 = vrot.lane.b32.xlu0 %v424, 32
        %v499 = vpop.permute.xlu0 %498
        %502 = vrot.lane.b32.xlu0 %v434, 40
        %v503 = vpop.permute.xlu0 %502
        %506 = vrot.lane.b32.xlu0 %v431, 48
        %v507 = vpop.permute.xlu0 %506
        %510 = vrot.lane.b32.xlu0 %v435, 56
        %v511 = vpop.permute.xlu0 %510
        %514 = vrot.lane.b32.xlu0 %v458, 64
        %v515 = vpop.permute.xlu0 %514
        %518 = vrot.lane.b32.xlu0 %v481, 72
        %v519 = vpop.permute.xlu0 %518
        %522 = vrot.lane.b32.xlu0 %v465, 80
        %v523 = vpop.permute.xlu0 %522
        %526 = vrot.lane.b32.xlu0 %v482, 88
        %v527 = vpop.permute.xlu0 %526
        %530 = vrot.lane.b32.xlu0 %v473, 96
        %v531 = vpop.permute.xlu0 %530
        %534 = vrot.lane.b32.xlu0 %v483, 104
        %v535 = vpop.permute.xlu0 %534
        %538 = vrot.lane.b32.xlu0 %v480, 112
        %v539 = vpop.permute.xlu0 %538
        %542 = vrot.lane.b32.xlu0 %v484, 120
        %v543 = vpop.permute.xlu0 %542
        %v545 = vsel %vm203, %v409, %v487
        %v546 = vsel %vm206, %v545, %v491
        %v547 = vsel %vm219, %v546, %v495
        %vm548 = vcmask 261120
        %v549 = vsel %vm548, %v547, %v499
        %vm550 = vcmask 326656
        %v551 = vsel %vm550, %v549, %v503
        %vm552 = vcmask 392192
        %v553 = vsel %vm552, %v551, %v507
        %vm554 = vcmask 457728
        %v555 = vsel %vm554, %v553, %v511
        %vm556 = vcmask 523264
        %v557 = vsel %vm556, %v555, %v515
        %vm558 = vcmask 588800
        %v559 = vsel %vm558, %v557, %v519
        %vm560 = vcmask 654336
        %v561 = vsel %vm560, %v559, %v523
        %vm562 = vcmask 719872
        %v563 = vsel %vm562, %v561, %v527
        %vm564 = vcmask 785408
        %v565 = vsel %vm564, %v563, %v531
        %vm566 = vcmask 850944
        %v567 = vsel %vm566, %v565, %v535
        %vm568 = vcmask 916480
        %v569 = vsel %vm568, %v567, %v539
        %vm570 = vcmask 982016
        %v571 = vsel %vm570, %v569, %v543
        %572 = vst [vmem:[%s162] sm:$0x1] %v571
        %s573 = sand.u32 %s93, 1
        %s574 = scalar_lea.sflag [#allocation3], %s573
        %s575 = sand.u32 %s93, 1
        %s576 = scalar_lea.vmem [#allocation2], %s575
        // Predicated region
        $region33: #{tpu_custom_call.1} parent=31 // pred_check
          %p577 = pneg %p103
        $region34: #{tpu_custom_call.1} parent=31 // pred_check_branch
          %579 = sbr.rel (%p577) target = $region36
        $region35: #{tpu_custom_call.1} parent=31 // pred_region
          %s581 = ssub.s32 16, 16
          %582 = vsyncadd %s574, %s581
          %s583 = smul.addr %s17, 16
          %s584 = scalar_lea.hbm %s3, %s583
          %s586 = sshll.u32 %s576, 4
          %s587 = int_to_ptr.vmem [resolvable:$true] %s586
          %589 = dma.vmem_to_hbm [thread:$0]  %s587, 16, %s584, %s574
        $region36: #{tpu_custom_call.1} parent=31 // pred_fallthru
          _
      $region32: #{tpu_custom_call.1} parent=5 // pred_fallthru
        _
      %p590 = scmp.le.s32.totalorder 2, %s12
      // Predicated region
      $region37: #{tpu_custom_call.1} parent=5 // pred_check
        %p591 = pneg %p590
      $region38: #{tpu_custom_call.1} parent=5 // pred_check_branch
        %593 = sbr.rel (%p591) target = $region40
      $region39: #{tpu_custom_call.1} parent=5 // pred_region
        %s594 = ssub.s32 %s12, 2
        // Predicated region
        $region41: #{tpu_custom_call.1} parent=39 // pred_check
          %p595 = pneg %p109
        $region42: #{tpu_custom_call.1} parent=39 // pred_check_branch
          %597 = sbr.rel (%p595) target = $region44
        $region43: #{tpu_custom_call.1} parent=39 // pred_region
          %s598 = sand.u32 %s94, 1
          %s599 = scalar_lea.sflag [#allocation3], %s598
          %s600 = sand.u32 %s94, 1
          %s601 = scalar_lea.vmem [#allocation2], %s600
          %602 = dma.done %s599, 16
        $region44: #{tpu_custom_call.1} parent=39 // pred_fallthru
          _
      $region40: #{tpu_custom_call.1} parent=5 // pred_fallthru
        _
    $region6: #{tpu_custom_call.1} parent=1 // loop_footer
      %s16 = sadd.s32 1, %s12
    $region7: #{tpu_custom_call.1} parent=1 // loop_footer_branch
      %11 = sbr.rel target = $region3
    $region8: #{tpu_custom_call.1} parent=1 // loop_exit
      _
    %603 = vsyncpa [#allocation3], 1
    %s604 = scalar_lea.sflag [#allocation3], 1
    %605 = vsyncpa %s604, 1

</llo_original>
